<compile_context>
chip_gen: v6e
topology: v6e:2x2x1
jax: 0.10.0
libtpu: 0.0.40
codegen_flags: <defaults>
</compile_context>

<pallas_src>
import jax
import jax.numpy as jnp
from jax import lax
from jax.experimental import pallas as pl
from jax.experimental.pallas import tpu as pltpu


def lstm_tagger_kernel(embeds_ref, w_ih_t_ref, w_hh_t_ref, b_ref,
                       w_tag_t_ref, b_tag_ref, out_ref, h_all_ref):
    seq, _ = embeds_ref.shape
    H = w_hh_t_ref.shape[0]

    # Hoist the recurrent weight load out of the loop (vregs once).
    w_hh = w_hh_t_ref[...]                                        # (H, 4H)

    # Input projection for all timesteps at once on the MXU: (seq, E) @ (E, 4H).
    xproj = (jnp.dot(embeds_ref[...], w_ih_t_ref[...],
                     preferred_element_type=jnp.float32)
             + b_ref[...])                                        # (seq, 4H)

    h = jnp.zeros((1, H), jnp.float32)
    c = jnp.zeros((1, H), jnp.float32)

    # Fully unrolled sequential recurrence (seq is a Python int).
    # PyTorch gate order: i, f, g, o.
    for t in range(seq):
        gates = xproj[t:t + 1, :] + jnp.dot(
            h, w_hh, preferred_element_type=jnp.float32)          # (1, 4H)

        # Full-width transcendentals (2 EUP pushes/step instead of 4 narrow).
        sig = jax.nn.sigmoid(gates)
        th = jnp.tanh(gates)
        i_g = sig[:, 0 * H:1 * H]
        f_g = sig[:, 1 * H:2 * H]
        g_g = th[:, 2 * H:3 * H]
        o_g = sig[:, 3 * H:4 * H]

        c = f_g * c + i_g * g_g
        h = o_g * jnp.tanh(c)
        h_all_ref[pl.ds(t, 1), :] = h                             # static slice

    # hidden2tag (lane-padded) + log_softmax over the tag dimension.
    # Padded columns carry bias -1e30 -> exp() underflows to 0, so the
    # normalization over the real T lanes is exact.
    h_all = h_all_ref[...]                                        # (seq, H)
    tag_space = (jnp.dot(h_all, w_tag_t_ref[...],
                         preferred_element_type=jnp.float32)
                 + b_tag_ref[...])                                # (seq, Tpad)
    m = jnp.max(tag_space, axis=1, keepdims=True)
    z = tag_space - m
    out_ref[...] = z - jnp.log(jnp.sum(jnp.exp(z), axis=1, keepdims=True))


@jax.jit
def lstm_tagger_forward(sentence, emb_table, w_ih, w_hh, b_ih, b_hh,
                        w_tag, b_tag):
    # Glue: embedding gather + weight layout (transpose / lane-pad).
    # TODO(synk): fuse the gather into the kernel (scalar-prefetch + pl.Element)
    # once seq / E are large enough for it to matter.
    embeds = jnp.take(emb_table, sentence, axis=0).astype(jnp.float32)  # (seq,E)
    seq, _ = embeds.shape
    H = w_hh.shape[1]
    T = w_tag.shape[0]

    LANE = 128
    t_pad = max(LANE, ((T + LANE - 1) // LANE) * LANE)    # lane-dense output

    w_ih_t = w_ih.T.astype(jnp.float32)                   # (E, 4H)
    w_hh_t = w_hh.T.astype(jnp.float32)                   # (H, 4H)
    b = (b_ih + b_hh).reshape(1, 4 * H).astype(jnp.float32)

    # Pad hidden2tag to lane-dense width; padded bias is very negative so the
    # padded logits vanish under softmax.
    w_tag_t = jnp.zeros((H, t_pad), jnp.float32).at[:, :T].set(w_tag.T)
    b_tag_p = jnp.full((1, t_pad), -1e30, jnp.float32).at[0, :T].set(b_tag)

    full = lambda shape: pl.BlockSpec(shape, lambda: (0,) * len(shape))

    out_padded = pl.pallas_call(
        lstm_tagger_kernel,
        out_shape=jax.ShapeDtypeStruct((seq, t_pad), jnp.float32),
        in_specs=[
            full(embeds.shape),
            full(w_ih_t.shape),
            full(w_hh_t.shape),
            full(b.shape),
            full(w_tag_t.shape),
            full(b_tag_p.shape),
        ],
        out_specs=full((seq, t_pad)),
        scratch_shapes=[
            pltpu.VMEM((seq, H), jnp.float32),            # all hidden states
        ],
    )(embeds, w_ih_t, w_hh_t, b, w_tag_t, b_tag_p)

    return out_padded[:, :T]


def reference_forward(sentence, emb_table, w_ih, w_hh, b_ih, b_hh, w_tag, b_tag):
    """Pure-JAX reference mirroring PyTorch semantics (for sanity checking)."""
    embeds = jnp.take(emb_table, sentence, axis=0)
    H = w_hh.shape[1]

    def step(carry, x):
        h, c = carry
        gates = x @ w_ih.T + b_ih + h @ w_hh.T + b_hh
        i = jax.nn.sigmoid(gates[0:H])
        f = jax.nn.sigmoid(gates[H:2 * H])
        g = jnp.tanh(gates[2 * H:3 * H])
        o = jax.nn.sigmoid(gates[3 * H:4 * H])
        c_new = f * c + i * g
        h_new = o * jnp.tanh(c_new)
        return (h_new, c_new), h_new

    h0 = jnp.zeros((H,), jnp.float32)
    (_, _), hs = lax.scan(step, (h0, h0), embeds)
    tag_space = hs @ w_tag.T + b_tag
    return jax.nn.log_softmax(tag_space, axis=1)


if __name__ == "__main__":
    # Small, deterministic configuration.
    embedding_dim = 32
    hidden_dim = 32
    vocab_size = 50
    tagset_size = 8
    seq_len = 8

    key = jax.random.PRNGKey(0)
    k_emb, k_wih, k_whh, k_bih, k_bhh, k_wt, k_bt, k_sent = jax.random.split(key, 8)

    scale = 1.0 / jnp.sqrt(hidden_dim)
    emb_table = jax.random.normal(k_emb, (vocab_size, embedding_dim), jnp.float32)
    w_ih = scale * jax.random.normal(k_wih, (4 * hidden_dim, embedding_dim), jnp.float32)
    w_hh = scale * jax.random.normal(k_whh, (4 * hidden_dim, hidden_dim), jnp.float32)
    b_ih = scale * jax.random.normal(k_bih, (4 * hidden_dim,), jnp.float32)
    b_hh = scale * jax.random.normal(k_bhh, (4 * hidden_dim,), jnp.float32)
    w_tag = scale * jax.random.normal(k_wt, (tagset_size, hidden_dim), jnp.float32)
    b_tag = scale * jax.random.normal(k_bt, (tagset_size,), jnp.float32)

    sentence = jax.random.randint(k_sent, (seq_len,), 0, vocab_size, dtype=jnp.int32)

    out = lstm_tagger_forward(sentence, emb_table, w_ih, w_hh, b_ih, b_hh,
                              w_tag, b_tag)
    out = jax.block_until_ready(out)

    ref = reference_forward(sentence, emb_table, w_ih, w_hh, b_ih, b_hh,
                            w_tag, b_tag)
    assert out.shape == (seq_len, tagset_size)
    assert jnp.allclose(out, ref, atol=1e-4, rtol=1e-4), "mismatch vs JAX reference"

    print("KERNEL_OK")
</pallas_src>

<mosaic_0001>
module attributes {stable_mosaic.version = 11 : i64} {
  func.func @lstm_tagger_kernel(%arg0: memref<8x32xf32, #tpu.memory_space<vmem>>, %arg1: memref<32x128xf32, #tpu.memory_space<vmem>>, %arg2: memref<32x128xf32, #tpu.memory_space<vmem>>, %arg3: memref<1x128xf32, #tpu.memory_space<vmem>>, %arg4: memref<32x128xf32, #tpu.memory_space<vmem>>, %arg5: memref<1x128xf32, #tpu.memory_space<vmem>>, %arg6: memref<8x128xf32, #tpu.memory_space<vmem>>, %arg7: memref<8x32xf32, #tpu.memory_space<vmem>>) attributes {dimension_semantics = [], scalar_prefetch = 0 : i64, scratch_operands = 1 : i64, tpu.core_type = #tpu.core_type<tc>} {
    %c0 = arith.constant 0 : index
    %c0_0 = arith.constant 0 : index
    %0 = vector.load %arg2[%c0, %c0_0] : memref<32x128xf32, #tpu.memory_space<vmem>>, vector<32x128xf32>
    %c0_1 = arith.constant 0 : index
    %c0_2 = arith.constant 0 : index
    %1 = vector.load %arg0[%c0_1, %c0_2] : memref<8x32xf32, #tpu.memory_space<vmem>>, vector<8x32xf32>
    %c0_3 = arith.constant 0 : index
    %c0_4 = arith.constant 0 : index
    %2 = vector.load %arg1[%c0_3, %c0_4] : memref<32x128xf32, #tpu.memory_space<vmem>>, vector<32x128xf32>
    %cst = arith.constant dense<0.000000e+00> : vector<8x128xf32>
    %3 = tpu.matmul %1, %2, %cst {dimension_numbers = #tpu.dot_dimension_numbers<[1], [0], [0], [1], [0, 0, 1, 1], [], []>} : vector<8x32xf32>, vector<32x128xf32>, vector<8x128xf32> -> vector<8x128xf32>
    %c0_5 = arith.constant 0 : index
    %c0_6 = arith.constant 0 : index
    %4 = vector.load %arg3[%c0_5, %c0_6] : memref<1x128xf32, #tpu.memory_space<vmem>>, vector<1x128xf32>
    %5 = vector.broadcast %4 : vector<1x128xf32> to vector<8x128xf32>
    %6 = arith.addf %3, %5 : vector<8x128xf32>
    %cst_7 = arith.constant 0.000000e+00 : f32
    %7 = vector.broadcast %cst_7 : f32 to vector<1x32xf32>
    %cst_8 = arith.constant 0.000000e+00 : f32
    %8 = vector.broadcast %cst_8 : f32 to vector<1x32xf32>
    %9 = vector.extract_strided_slice %6 {offsets = [0, 0], sizes = [1, 128], strides = [1, 1]} : vector<8x128xf32> to vector<1x128xf32>
    %cst_9 = arith.constant dense<0.000000e+00> : vector<1x128xf32>
    %10 = tpu.matmul %7, %0, %cst_9 {dimension_numbers = #tpu.dot_dimension_numbers<[1], [0], [0], [1], [0, 0, 1, 1], [], []>} : vector<1x32xf32>, vector<32x128xf32>, vector<1x128xf32> -> vector<1x128xf32>
    %11 = arith.addf %9, %10 : vector<1x128xf32>
    %12 = arith.negf %11 : vector<1x128xf32>
    %13 = math.exp %12 : vector<1x128xf32>
    %cst_10 = arith.constant 1.000000e+00 : f32
    %14 = vector.broadcast %cst_10 : f32 to vector<1x128xf32>
    %15 = arith.addf %14, %13 : vector<1x128xf32>
    %16 = arith.divf %14, %15 : vector<1x128xf32>
    %17 = math.tanh %11 : vector<1x128xf32>
    %18 = vector.extract_strided_slice %16 {offsets = [0, 0], sizes = [1, 32], strides = [1, 1]} : vector<1x128xf32> to vector<1x32xf32>
    %19 = vector.extract_strided_slice %16 {offsets = [0, 32], sizes = [1, 32], strides = [1, 1]} : vector<1x128xf32> to vector<1x32xf32>
    %20 = vector.extract_strided_slice %17 {offsets = [0, 64], sizes = [1, 32], strides = [1, 1]} : vector<1x128xf32> to vector<1x32xf32>
    %21 = vector.extract_strided_slice %16 {offsets = [0, 96], sizes = [1, 32], strides = [1, 1]} : vector<1x128xf32> to vector<1x32xf32>
    %22 = arith.mulf %19, %8 : vector<1x32xf32>
    %23 = arith.mulf %18, %20 : vector<1x32xf32>
    %24 = arith.addf %22, %23 : vector<1x32xf32>
    %25 = math.tanh %24 : vector<1x32xf32>
    %26 = arith.mulf %21, %25 : vector<1x32xf32>
    %c0_11 = arith.constant 0 : index
    %c0_12 = arith.constant 0 : index
    %27 = vector.load %arg7[%c0_11, %c0_12] : memref<8x32xf32, #tpu.memory_space<vmem>>, vector<1x32xf32>
    tpu.vector_store %arg7[%c0_11, %c0_12], %26 {strides = array<i32>} : memref<8x32xf32, #tpu.memory_space<vmem>>, vector<1x32xf32>,
    %28 = vector.extract_strided_slice %6 {offsets = [1, 0], sizes = [1, 128], strides = [1, 1]} : vector<8x128xf32> to vector<1x128xf32>
    %cst_13 = arith.constant dense<0.000000e+00> : vector<1x128xf32>
    %29 = tpu.matmul %26, %0, %cst_13 {dimension_numbers = #tpu.dot_dimension_numbers<[1], [0], [0], [1], [0, 0, 1, 1], [], []>} : vector<1x32xf32>, vector<32x128xf32>, vector<1x128xf32> -> vector<1x128xf32>
    %30 = arith.addf %28, %29 : vector<1x128xf32>
    %31 = arith.negf %30 : vector<1x128xf32>
    %32 = math.exp %31 : vector<1x128xf32>
    %cst_14 = arith.constant 1.000000e+00 : f32
    %33 = vector.broadcast %cst_14 : f32 to vector<1x128xf32>
    %34 = arith.addf %33, %32 : vector<1x128xf32>
    %35 = arith.divf %33, %34 : vector<1x128xf32>
    %36 = math.tanh %30 : vector<1x128xf32>
    %37 = vector.extract_strided_slice %35 {offsets = [0, 0], sizes = [1, 32], strides = [1, 1]} : vector<1x128xf32> to vector<1x32xf32>
    %38 = vector.extract_strided_slice %35 {offsets = [0, 32], sizes = [1, 32], strides = [1, 1]} : vector<1x128xf32> to vector<1x32xf32>
    %39 = vector.extract_strided_slice %36 {offsets = [0, 64], sizes = [1, 32], strides = [1, 1]} : vector<1x128xf32> to vector<1x32xf32>
    %40 = vector.extract_strided_slice %35 {offsets = [0, 96], sizes = [1, 32], strides = [1, 1]} : vector<1x128xf32> to vector<1x32xf32>
    %41 = arith.mulf %38, %24 : vector<1x32xf32>
    %42 = arith.mulf %37, %39 : vector<1x32xf32>
    %43 = arith.addf %41, %42 : vector<1x32xf32>
    %44 = math.tanh %43 : vector<1x32xf32>
    %45 = arith.mulf %40, %44 : vector<1x32xf32>
    %c1 = arith.constant 1 : index
    %c0_15 = arith.constant 0 : index
    %46 = vector.load %arg7[%c1, %c0_15] : memref<8x32xf32, #tpu.memory_space<vmem>>, vector<1x32xf32>
    tpu.vector_store %arg7[%c1, %c0_15], %45 {strides = array<i32>} : memref<8x32xf32, #tpu.memory_space<vmem>>, vector<1x32xf32>,
    %47 = vector.extract_strided_slice %6 {offsets = [2, 0], sizes = [1, 128], strides = [1, 1]} : vector<8x128xf32> to vector<1x128xf32>
    %cst_16 = arith.constant dense<0.000000e+00> : vector<1x128xf32>
    %48 = tpu.matmul %45, %0, %cst_16 {dimension_numbers = #tpu.dot_dimension_numbers<[1], [0], [0], [1], [0, 0, 1, 1], [], []>} : vector<1x32xf32>, vector<32x128xf32>, vector<1x128xf32> -> vector<1x128xf32>
    %49 = arith.addf %47, %48 : vector<1x128xf32>
    %50 = arith.negf %49 : vector<1x128xf32>
    %51 = math.exp %50 : vector<1x128xf32>
    %cst_17 = arith.constant 1.000000e+00 : f32
    %52 = vector.broadcast %cst_17 : f32 to vector<1x128xf32>
    %53 = arith.addf %52, %51 : vector<1x128xf32>
    %54 = arith.divf %52, %53 : vector<1x128xf32>
    %55 = math.tanh %49 : vector<1x128xf32>
    %56 = vector.extract_strided_slice %54 {offsets = [0, 0], sizes = [1, 32], strides = [1, 1]} : vector<1x128xf32> to vector<1x32xf32>
    %57 = vector.extract_strided_slice %54 {offsets = [0, 32], sizes = [1, 32], strides = [1, 1]} : vector<1x128xf32> to vector<1x32xf32>
    %58 = vector.extract_strided_slice %55 {offsets = [0, 64], sizes = [1, 32], strides = [1, 1]} : vector<1x128xf32> to vector<1x32xf32>
    %59 = vector.extract_strided_slice %54 {offsets = [0, 96], sizes = [1, 32], strides = [1, 1]} : vector<1x128xf32> to vector<1x32xf32>
    %60 = arith.mulf %57, %43 : vector<1x32xf32>
    %61 = arith.mulf %56, %58 : vector<1x32xf32>
    %62 = arith.addf %60, %61 : vector<1x32xf32>
    %63 = math.tanh %62 : vector<1x32xf32>
    %64 = arith.mulf %59, %63 : vector<1x32xf32>
    %c2 = arith.constant 2 : index
    %c0_18 = arith.constant 0 : index
    %65 = vector.load %arg7[%c2, %c0_18] : memref<8x32xf32, #tpu.memory_space<vmem>>, vector<1x32xf32>
    tpu.vector_store %arg7[%c2, %c0_18], %64 {strides = array<i32>} : memref<8x32xf32, #tpu.memory_space<vmem>>, vector<1x32xf32>,
    %66 = vector.extract_strided_slice %6 {offsets = [3, 0], sizes = [1, 128], strides = [1, 1]} : vector<8x128xf32> to vector<1x128xf32>
    %cst_19 = arith.constant dense<0.000000e+00> : vector<1x128xf32>
    %67 = tpu.matmul %64, %0, %cst_19 {dimension_numbers = #tpu.dot_dimension_numbers<[1], [0], [0], [1], [0, 0, 1, 1], [], []>} : vector<1x32xf32>, vector<32x128xf32>, vector<1x128xf32> -> vector<1x128xf32>
    %68 = arith.addf %66, %67 : vector<1x128xf32>
    %69 = arith.negf %68 : vector<1x128xf32>
    %70 = math.exp %69 : vector<1x128xf32>
    %cst_20 = arith.constant 1.000000e+00 : f32
    %71 = vector.broadcast %cst_20 : f32 to vector<1x128xf32>
    %72 = arith.addf %71, %70 : vector<1x128xf32>
    %73 = arith.divf %71, %72 : vector<1x128xf32>
    %74 = math.tanh %68 : vector<1x128xf32>
    %75 = vector.extract_strided_slice %73 {offsets = [0, 0], sizes = [1, 32], strides = [1, 1]} : vector<1x128xf32> to vector<1x32xf32>
    %76 = vector.extract_strided_slice %73 {offsets = [0, 32], sizes = [1, 32], strides = [1, 1]} : vector<1x128xf32> to vector<1x32xf32>
    %77 = vector.extract_strided_slice %74 {offsets = [0, 64], sizes = [1, 32], strides = [1, 1]} : vector<1x128xf32> to vector<1x32xf32>
    %78 = vector.extract_strided_slice %73 {offsets = [0, 96], sizes = [1, 32], strides = [1, 1]} : vector<1x128xf32> to vector<1x32xf32>
    %79 = arith.mulf %76, %62 : vector<1x32xf32>
    %80 = arith.mulf %75, %77 : vector<1x32xf32>
    %81 = arith.addf %79, %80 : vector<1x32xf32>
    %82 = math.tanh %81 : vector<1x32xf32>
    %83 = arith.mulf %78, %82 : vector<1x32xf32>
    %c3 = arith.constant 3 : index
    %c0_21 = arith.constant 0 : index
    %84 = vector.load %arg7[%c3, %c0_21] : memref<8x32xf32, #tpu.memory_space<vmem>>, vector<1x32xf32>
    tpu.vector_store %arg7[%c3, %c0_21], %83 {strides = array<i32>} : memref<8x32xf32, #tpu.memory_space<vmem>>, vector<1x32xf32>,
    %85 = vector.extract_strided_slice %6 {offsets = [4, 0], sizes = [1, 128], strides = [1, 1]} : vector<8x128xf32> to vector<1x128xf32>
    %cst_22 = arith.constant dense<0.000000e+00> : vector<1x128xf32>
    %86 = tpu.matmul %83, %0, %cst_22 {dimension_numbers = #tpu.dot_dimension_numbers<[1], [0], [0], [1], [0, 0, 1, 1], [], []>} : vector<1x32xf32>, vector<32x128xf32>, vector<1x128xf32> -> vector<1x128xf32>
    %87 = arith.addf %85, %86 : vector<1x128xf32>
    %88 = arith.negf %87 : vector<1x128xf32>
    %89 = math.exp %88 : vector<1x128xf32>
    %cst_23 = arith.constant 1.000000e+00 : f32
    %90 = vector.broadcast %cst_23 : f32 to vector<1x128xf32>
    %91 = arith.addf %90, %89 : vector<1x128xf32>
    %92 = arith.divf %90, %91 : vector<1x128xf32>
    %93 = math.tanh %87 : vector<1x128xf32>
    %94 = vector.extract_strided_slice %92 {offsets = [0, 0], sizes = [1, 32], strides = [1, 1]} : vector<1x128xf32> to vector<1x32xf32>
    %95 = vector.extract_strided_slice %92 {offsets = [0, 32], sizes = [1, 32], strides = [1, 1]} : vector<1x128xf32> to vector<1x32xf32>
    %96 = vector.extract_strided_slice %93 {offsets = [0, 64], sizes = [1, 32], strides = [1, 1]} : vector<1x128xf32> to vector<1x32xf32>
    %97 = vector.extract_strided_slice %92 {offsets = [0, 96], sizes = [1, 32], strides = [1, 1]} : vector<1x128xf32> to vector<1x32xf32>
    %98 = arith.mulf %95, %81 : vector<1x32xf32>
    %99 = arith.mulf %94, %96 : vector<1x32xf32>
    %100 = arith.addf %98, %99 : vector<1x32xf32>
    %101 = math.tanh %100 : vector<1x32xf32>
    %102 = arith.mulf %97, %101 : vector<1x32xf32>
    %c4 = arith.constant 4 : index
    %c0_24 = arith.constant 0 : index
    %103 = vector.load %arg7[%c4, %c0_24] : memref<8x32xf32, #tpu.memory_space<vmem>>, vector<1x32xf32>
    tpu.vector_store %arg7[%c4, %c0_24], %102 {strides = array<i32>} : memref<8x32xf32, #tpu.memory_space<vmem>>, vector<1x32xf32>,
    %104 = vector.extract_strided_slice %6 {offsets = [5, 0], sizes = [1, 128], strides = [1, 1]} : vector<8x128xf32> to vector<1x128xf32>
    %cst_25 = arith.constant dense<0.000000e+00> : vector<1x128xf32>
    %105 = tpu.matmul %102, %0, %cst_25 {dimension_numbers = #tpu.dot_dimension_numbers<[1], [0], [0], [1], [0, 0, 1, 1], [], []>} : vector<1x32xf32>, vector<32x128xf32>, vector<1x128xf32> -> vector<1x128xf32>
    %106 = arith.addf %104, %105 : vector<1x128xf32>
    %107 = arith.negf %106 : vector<1x128xf32>
    %108 = math.exp %107 : vector<1x128xf32>
    %cst_26 = arith.constant 1.000000e+00 : f32
    %109 = vector.broadcast %cst_26 : f32 to vector<1x128xf32>
    %110 = arith.addf %109, %108 : vector<1x128xf32>
    %111 = arith.divf %109, %110 : vector<1x128xf32>
    %112 = math.tanh %106 : vector<1x128xf32>
    %113 = vector.extract_strided_slice %111 {offsets = [0, 0], sizes = [1, 32], strides = [1, 1]} : vector<1x128xf32> to vector<1x32xf32>
    %114 = vector.extract_strided_slice %111 {offsets = [0, 32], sizes = [1, 32], strides = [1, 1]} : vector<1x128xf32> to vector<1x32xf32>
    %115 = vector.extract_strided_slice %112 {offsets = [0, 64], sizes = [1, 32], strides = [1, 1]} : vector<1x128xf32> to vector<1x32xf32>
    %116 = vector.extract_strided_slice %111 {offsets = [0, 96], sizes = [1, 32], strides = [1, 1]} : vector<1x128xf32> to vector<1x32xf32>
    %117 = arith.mulf %114, %100 : vector<1x32xf32>
    %118 = arith.mulf %113, %115 : vector<1x32xf32>
    %119 = arith.addf %117, %118 : vector<1x32xf32>
    %120 = math.tanh %119 : vector<1x32xf32>
    %121 = arith.mulf %116, %120 : vector<1x32xf32>
    %c5 = arith.constant 5 : index
    %c0_27 = arith.constant 0 : index
    %122 = vector.load %arg7[%c5, %c0_27] : memref<8x32xf32, #tpu.memory_space<vmem>>, vector<1x32xf32>
    tpu.vector_store %arg7[%c5, %c0_27], %121 {strides = array<i32>} : memref<8x32xf32, #tpu.memory_space<vmem>>, vector<1x32xf32>,
    %123 = vector.extract_strided_slice %6 {offsets = [6, 0], sizes = [1, 128], strides = [1, 1]} : vector<8x128xf32> to vector<1x128xf32>
    %cst_28 = arith.constant dense<0.000000e+00> : vector<1x128xf32>
    %124 = tpu.matmul %121, %0, %cst_28 {dimension_numbers = #tpu.dot_dimension_numbers<[1], [0], [0], [1], [0, 0, 1, 1], [], []>} : vector<1x32xf32>, vector<32x128xf32>, vector<1x128xf32> -> vector<1x128xf32>
    %125 = arith.addf %123, %124 : vector<1x128xf32>
    %126 = arith.negf %125 : vector<1x128xf32>
    %127 = math.exp %126 : vector<1x128xf32>
    %cst_29 = arith.constant 1.000000e+00 : f32
    %128 = vector.broadcast %cst_29 : f32 to vector<1x128xf32>
    %129 = arith.addf %128, %127 : vector<1x128xf32>
    %130 = arith.divf %128, %129 : vector<1x128xf32>
    %131 = math.tanh %125 : vector<1x128xf32>
    %132 = vector.extract_strided_slice %130 {offsets = [0, 0], sizes = [1, 32], strides = [1, 1]} : vector<1x128xf32> to vector<1x32xf32>
    %133 = vector.extract_strided_slice %130 {offsets = [0, 32], sizes = [1, 32], strides = [1, 1]} : vector<1x128xf32> to vector<1x32xf32>
    %134 = vector.extract_strided_slice %131 {offsets = [0, 64], sizes = [1, 32], strides = [1, 1]} : vector<1x128xf32> to vector<1x32xf32>
    %135 = vector.extract_strided_slice %130 {offsets = [0, 96], sizes = [1, 32], strides = [1, 1]} : vector<1x128xf32> to vector<1x32xf32>
    %136 = arith.mulf %133, %119 : vector<1x32xf32>
    %137 = arith.mulf %132, %134 : vector<1x32xf32>
    %138 = arith.addf %136, %137 : vector<1x32xf32>
    %139 = math.tanh %138 : vector<1x32xf32>
    %140 = arith.mulf %135, %139 : vector<1x32xf32>
    %c6 = arith.constant 6 : index
    %c0_30 = arith.constant 0 : index
    %141 = vector.load %arg7[%c6, %c0_30] : memref<8x32xf32, #tpu.memory_space<vmem>>, vector<1x32xf32>
    tpu.vector_store %arg7[%c6, %c0_30], %140 {strides = array<i32>} : memref<8x32xf32, #tpu.memory_space<vmem>>, vector<1x32xf32>,
    %142 = vector.extract_strided_slice %6 {offsets = [7, 0], sizes = [1, 128], strides = [1, 1]} : vector<8x128xf32> to vector<1x128xf32>
    %cst_31 = arith.constant dense<0.000000e+00> : vector<1x128xf32>
    %143 = tpu.matmul %140, %0, %cst_31 {dimension_numbers = #tpu.dot_dimension_numbers<[1], [0], [0], [1], [0, 0, 1, 1], [], []>} : vector<1x32xf32>, vector<32x128xf32>, vector<1x128xf32> -> vector<1x128xf32>
    %144 = arith.addf %142, %143 : vector<1x128xf32>
    %145 = arith.negf %144 : vector<1x128xf32>
    %146 = math.exp %145 : vector<1x128xf32>
    %cst_32 = arith.constant 1.000000e+00 : f32
    %147 = vector.broadcast %cst_32 : f32 to vector<1x128xf32>
    %148 = arith.addf %147, %146 : vector<1x128xf32>
    %149 = arith.divf %147, %148 : vector<1x128xf32>
    %150 = math.tanh %144 : vector<1x128xf32>
    %151 = vector.extract_strided_slice %149 {offsets = [0, 0], sizes = [1, 32], strides = [1, 1]} : vector<1x128xf32> to vector<1x32xf32>
    %152 = vector.extract_strided_slice %149 {offsets = [0, 32], sizes = [1, 32], strides = [1, 1]} : vector<1x128xf32> to vector<1x32xf32>
    %153 = vector.extract_strided_slice %150 {offsets = [0, 64], sizes = [1, 32], strides = [1, 1]} : vector<1x128xf32> to vector<1x32xf32>
    %154 = vector.extract_strided_slice %149 {offsets = [0, 96], sizes = [1, 32], strides = [1, 1]} : vector<1x128xf32> to vector<1x32xf32>
    %155 = arith.mulf %152, %138 : vector<1x32xf32>
    %156 = arith.mulf %151, %153 : vector<1x32xf32>
    %157 = arith.addf %155, %156 : vector<1x32xf32>
    %158 = math.tanh %157 : vector<1x32xf32>
    %159 = arith.mulf %154, %158 : vector<1x32xf32>
    %c7 = arith.constant 7 : index
    %c0_33 = arith.constant 0 : index
    %160 = vector.load %arg7[%c7, %c0_33] : memref<8x32xf32, #tpu.memory_space<vmem>>, vector<1x32xf32>
    tpu.vector_store %arg7[%c7, %c0_33], %159 {strides = array<i32>} : memref<8x32xf32, #tpu.memory_space<vmem>>, vector<1x32xf32>,
    %c0_34 = arith.constant 0 : index
    %c0_35 = arith.constant 0 : index
    %161 = vector.load %arg7[%c0_34, %c0_35] : memref<8x32xf32, #tpu.memory_space<vmem>>, vector<8x32xf32>
    %c0_36 = arith.constant 0 : index
    %c0_37 = arith.constant 0 : index
    %162 = vector.load %arg4[%c0_36, %c0_37] : memref<32x128xf32, #tpu.memory_space<vmem>>, vector<32x128xf32>
    %cst_38 = arith.constant dense<0.000000e+00> : vector<8x128xf32>
    %163 = tpu.matmul %161, %162, %cst_38 {dimension_numbers = #tpu.dot_dimension_numbers<[1], [0], [0], [1], [0, 0, 1, 1], [], []>} : vector<8x32xf32>, vector<32x128xf32>, vector<8x128xf32> -> vector<8x128xf32>
    %c0_39 = arith.constant 0 : index
    %c0_40 = arith.constant 0 : index
    %164 = vector.load %arg5[%c0_39, %c0_40] : memref<1x128xf32, #tpu.memory_space<vmem>>, vector<1x128xf32>
    %165 = vector.broadcast %164 : vector<1x128xf32> to vector<8x128xf32>
    %166 = arith.addf %163, %165 : vector<8x128xf32>
    %cst_41 = arith.constant dense<0xFF800000> : vector<8xf32>
    %167 = vector.multi_reduction <maximumf>, %166, %cst_41 [1] : vector<8x128xf32> to vector<8xf32>
    %168 = vector.shape_cast %167 : vector<8xf32> to vector<8x1xf32>
    %169 = vector.broadcast %168 : vector<8x1xf32> to vector<8x128xf32>
    %170 = arith.subf %166, %169 : vector<8x128xf32>
    %171 = math.exp %170 : vector<8x128xf32>
    %cst_42 = arith.constant dense<0.000000e+00> : vector<8xf32>
    %172 = vector.multi_reduction <add>, %171, %cst_42 [1] : vector<8x128xf32> to vector<8xf32>
    %173 = vector.shape_cast %172 : vector<8xf32> to vector<8x1xf32>
    %174 = math.log %173 : vector<8x1xf32>
    %175 = vector.broadcast %174 : vector<8x1xf32> to vector<8x128xf32>
    %176 = arith.subf %170, %175 : vector<8x128xf32>
    %c0_43 = arith.constant 0 : index
    %c0_44 = arith.constant 0 : index
    %177 = vector.load %arg6[%c0_43, %c0_44] : memref<8x128xf32, #tpu.memory_space<vmem>>, vector<8x128xf32>
    tpu.vector_store %arg6[%c0_43, %c0_44], %176 {strides = array<i32>} : memref<8x128xf32, #tpu.memory_space<vmem>>, vector<8x128xf32>,
    return
  }
}

</mosaic_0001>

<llo_original>
// kernel: lstm_tagger_forward.1
$region0: #{lstm_tagger_forward.1}
  #allocation0 [shape = 'u32[]', space=smem, size = 0x4, offset = 0x4, fixed_abs, tag = 'smem constant byte address 0x4 - core index']
  #allocation1 [shape = 'u32[144,128]{1,0:T(1,128)}', space=vmem, size = 0x12000, scoped, tag = 'internal scratch']
  #allocation2 [shape = 'f32[8,32]{1,0:T(8,128)}', space=vmem, size = 0x1000, scoped, tag = 'scratch operand']
  %s0 = inlined_call_operand.vmem [shape: f32[8,32], index: 0, kind: input, shape index: {}]
  %s1 = inlined_call_operand.vmem [shape: f32[32,128], index: 1, kind: input, shape index: {}]
  %s2 = inlined_call_operand.vmem [shape: f32[32,128], index: 2, kind: input, shape index: {}]
  %s3 = inlined_call_operand.vmem [shape: f32[1,128], index: 3, kind: input, shape index: {}]
  %s4 = inlined_call_operand.vmem [shape: f32[32,128], index: 4, kind: input, shape index: {}]
  %s5 = inlined_call_operand.vmem [shape: f32[1,128], index: 5, kind: input, shape index: {}]
  %s6 = inlined_call_operand.hbm [shape: f32[8,128], index: 6, kind: output, shape index: {}]
  %s7 = sld [smem:[#allocation0]]
  $region34: #{lstm_tagger_forward.1} parent=0
    _
  %s9 = ssub.s32 1, %s7
  %s10 = scalar_select 0, %s9, %s7
  $region1: #{lstm_tagger_forward.1} parent=0
    #allocation3 [shape = 'u8[4096]{0}', space=vmem, size = 0x1000, scoped, tag = 'output window, operand 0, single buffered']
    #allocation4 [shape = 's32[1]{0}', space=sflag, size = 0x4, scoped, tag = 'scoped memory for lstm_tagger_forward.1']
    %11 = vsyncpa [#allocation4], 0
    // Predicated region
    $region2: #{lstm_tagger_forward.1} parent=1 // pred_check
      _
    $region3: #{lstm_tagger_forward.1} parent=1 // pred_check_branch
      %13 = sbr.rel (0) target = $region5
    $region4: #{lstm_tagger_forward.1} parent=1 // pred_region
      _
    $region5: #{lstm_tagger_forward.1} parent=1 // pred_fallthru
      _
    // Predicated region
    $region6: #{lstm_tagger_forward.1} parent=1 // pred_check
      _
    $region7: #{lstm_tagger_forward.1} parent=1 // pred_check_branch
      %15 = sbr.rel (0) target = $region9
    $region8: #{lstm_tagger_forward.1} parent=1 // pred_region
      _
    $region9: #{lstm_tagger_forward.1} parent=1 // pred_fallthru
      _
    // Predicated region
    $region10: #{lstm_tagger_forward.1} parent=1 // pred_check
      _
    $region11: #{lstm_tagger_forward.1} parent=1 // pred_check_branch
      %17 = sbr.rel (0) target = $region13
    $region12: #{lstm_tagger_forward.1} parent=1 // pred_region
      _
    $region13: #{lstm_tagger_forward.1} parent=1 // pred_fallthru
      _
    // Predicated region
    $region14: #{lstm_tagger_forward.1} parent=1 // pred_check
      _
    $region15: #{lstm_tagger_forward.1} parent=1 // pred_check_branch
      %19 = sbr.rel (0) target = $region17
    $region16: #{lstm_tagger_forward.1} parent=1 // pred_region
      _
    $region17: #{lstm_tagger_forward.1} parent=1 // pred_fallthru
      _
    // Predicated region
    $region18: #{lstm_tagger_forward.1} parent=1 // pred_check
      _
    $region19: #{lstm_tagger_forward.1} parent=1 // pred_check_branch
      %21 = sbr.rel (0) target = $region21
    $region20: #{lstm_tagger_forward.1} parent=1 // pred_region
      _
    $region21: #{lstm_tagger_forward.1} parent=1 // pred_fallthru
      _
    // Predicated region
    $region22: #{lstm_tagger_forward.1} parent=1 // pred_check
      _
    $region23: #{lstm_tagger_forward.1} parent=1 // pred_check_branch
      %23 = sbr.rel (0) target = $region25
    $region24: #{lstm_tagger_forward.1} parent=1 // pred_region
      _
    $region25: #{lstm_tagger_forward.1} parent=1 // pred_fallthru
      _
    %v24 = vld [vmem:[%s2] sm:$0xff]
    %v25 = vld [vmem:[%s2 + $0x8] sm:$0xff]
    %v26 = vld [vmem:[%s2 + $0x10] sm:$0xff]
    %v27 = vld [vmem:[%s2 + $0x18] sm:$0xff]
    %v28 = vld [vmem:[%s0] sm:$0xff]
    %v29 = vld [vmem:[%s1] sm:$0xff]
    %v30 = vld [vmem:[%s1 + $0x8] sm:$0xff]
    %v31 = vld [vmem:[%s1 + $0x10] sm:$0xff]
    %v32 = vld [vmem:[%s1 + $0x18] sm:$0xff]
    %v33 = vld [vmem:[%s3] sm:$0x1]
    %v35 = vlaneseq
    %v36 = vshrl.u32 %v35, 7
    %v37 = vsub.s32 0, %v36
    %v38 = vrot.slane %v33, %v37
    %vm40 = vcmask 261120
    %v42 = vsel %vm40, %v28, 0
    %44 = vmatprep.subr.mxu0 0.0
    %45 = vmatpush1.msra.mxu0 0.0
    %46 = vmatprep.subr.mxu0 0.0
    %47 = vmatpush1.msra.mxu0 0.0
    %48 = vmatprep.subr.mxu0 0.0
    %49 = vmatpush1.msra.mxu0 0.0
    %50 = vmatprep.subr.mxu0 0.0
    %51 = vmatpush1.msra.mxu0 0.0
    %52 = vmatprep.subr.mxu0 0.0
    %53 = vmatpush1.msra.mxu0 0.0
    %54 = vmatprep.subr.mxu0 0.0
    %55 = vmatpush1.msra.mxu0 0.0
    %56 = vmatprep.subr.mxu0 0.0
    %57 = vmatpush1.msra.mxu0 0.0
    %58 = vmatprep.subr.mxu0 0.0
    %59 = vmatpush1.msra.mxu0 0.0
    %60 = vmatprep.subr.mxu0 0.0
    %61 = vmatpush1.msra.mxu0 0.0
    %62 = vmatprep.subr.mxu0 0.0
    %63 = vmatpush1.msra.mxu0 0.0
    %64 = vmatprep.subr.mxu0 0.0
    %65 = vmatpush1.msra.mxu0 0.0
    %66 = vmatprep.subr.mxu0 0.0
    %67 = vmatpush1.msra.mxu0 0.0
    %68 = vmatprep.subr.mxu0 0.0
    %69 = vmatpush1.msra.mxu0 %v32
    %70 = vmatprep.subr.mxu0 0.0
    %71 = vmatpush1.msra.mxu0 %v31
    %72 = vmatprep.subr.mxu0 0.0
    %73 = vmatpush1.msra.mxu0 %v30
    %74 = vmatprep.subr.mxu0 0.0
    %75 = vmatpush1.msra.mxu0 %v29
    %76 = vmatprep.subr.mxu0 0.0
    %77 = vmatpush2.msra.mxu0 0.0
    %78 = vmatprep.subr.mxu0 0.0
    %79 = vmatpush2.msra.mxu0 0.0
    %80 = vmatprep.subr.mxu0 0.0
    %81 = vmatpush2.msra.mxu0 0.0
    %82 = vmatprep.subr.mxu0 0.0
    %83 = vmatpush2.msra.mxu0 0.0
    %84 = vmatprep.subr.mxu0 0.0
    %85 = vmatpush2.msra.mxu0 0.0
    %86 = vmatprep.subr.mxu0 0.0
    %87 = vmatpush2.msra.mxu0 0.0
    %88 = vmatprep.subr.mxu0 0.0
    %89 = vmatpush2.msra.mxu0 0.0
    %90 = vmatprep.subr.mxu0 0.0
    %91 = vmatpush2.msra.mxu0 0.0
    %92 = vmatprep.subr.mxu0 0.0
    %93 = vmatpush2.msra.mxu0 0.0
    %94 = vmatprep.subr.mxu0 0.0
    %95 = vmatpush2.msra.mxu0 0.0
    %96 = vmatprep.subr.mxu0 0.0
    %97 = vmatpush2.msra.mxu0 0.0
    %98 = vmatprep.subr.mxu0 0.0
    %99 = vmatpush2.msra.mxu0 0.0
    %100 = vmatprep.subr.mxu0 0.0
    %101 = vmatpush2.msra.mxu0 0.0
    %102 = vmatprep.subr.mxu0 0.0
    %103 = vmatpush2.msra.mxu0 0.0
    %104 = vmatprep.subr.mxu0 0.0
    %105 = vmatpush2.msra.mxu0 0.0
    %106 = vmatprep.subr.mxu0 0.0
    %107 = vmatpush2.msra.mxu0 0.0
    %108 = vmatprep.mubr.f32.mxu0 0.0
    %109 = vmatmul.mubr.f32.gmra.mxu0 %v42
    %v110 = vpop.f32.mrf.mxu0
    %v111 = vadd.f32 %v38, %v110
    %v112 = vpop.f32.mrf.mxu0
    %113 = vdwg.mxu0
    %v115 = vsel %vm40, 0.0, 0
    %117 = vmatprep.subr.mxu0 0.0
    %118 = vmatpush1.msra.mxu0 0.0
    %119 = vmatprep.subr.mxu0 0.0
    %120 = vmatpush1.msra.mxu0 0.0
    %121 = vmatprep.subr.mxu0 0.0
    %122 = vmatpush1.msra.mxu0 0.0
    %123 = vmatprep.subr.mxu0 0.0
    %124 = vmatpush1.msra.mxu0 0.0
    %125 = vmatprep.subr.mxu0 0.0
    %126 = vmatpush1.msra.mxu0 0.0
    %127 = vmatprep.subr.mxu0 0.0
    %128 = vmatpush1.msra.mxu0 0.0
    %129 = vmatprep.subr.mxu0 0.0
    %130 = vmatpush1.msra.mxu0 0.0
    %131 = vmatprep.subr.mxu0 0.0
    %132 = vmatpush1.msra.mxu0 0.0
    %133 = vmatprep.subr.mxu0 0.0
    %134 = vmatpush1.msra.mxu0 0.0
    %135 = vmatprep.subr.mxu0 0.0
    %136 = vmatpush1.msra.mxu0 0.0
    %137 = vmatprep.subr.mxu0 0.0
    %138 = vmatpush1.msra.mxu0 0.0
    %139 = vmatprep.subr.mxu0 0.0
    %140 = vmatpush1.msra.mxu0 0.0
    %141 = vmatprep.subr.mxu0 0.0
    %142 = vmatpush1.msra.mxu0 %v27
    %143 = vmatprep.subr.mxu0 0.0
    %144 = vmatpush1.msra.mxu0 %v26
    %145 = vmatprep.subr.mxu0 0.0
    %146 = vmatpush1.msra.mxu0 %v25
    %147 = vmatprep.subr.mxu0 0.0
    %148 = vmatpush1.msra.mxu0 %v24
    %149 = vmatprep.subr.mxu0 0.0
    %150 = vmatpush2.msra.mxu0 0.0
    %151 = vmatprep.subr.mxu0 0.0
    %152 = vmatpush2.msra.mxu0 0.0
    %153 = vmatprep.subr.mxu0 0.0
    %154 = vmatpush2.msra.mxu0 0.0
    %155 = vmatprep.subr.mxu0 0.0
    %156 = vmatpush2.msra.mxu0 0.0
    %157 = vmatprep.subr.mxu0 0.0
    %158 = vmatpush2.msra.mxu0 0.0
    %159 = vmatprep.subr.mxu0 0.0
    %160 = vmatpush2.msra.mxu0 0.0
    %161 = vmatprep.subr.mxu0 0.0
    %162 = vmatpush2.msra.mxu0 0.0
    %163 = vmatprep.subr.mxu0 0.0
    %164 = vmatpush2.msra.mxu0 0.0
    %165 = vmatprep.subr.mxu0 0.0
    %166 = vmatpush2.msra.mxu0 0.0
    %167 = vmatprep.subr.mxu0 0.0
    %168 = vmatpush2.msra.mxu0 0.0
    %169 = vmatprep.subr.mxu0 0.0
    %170 = vmatpush2.msra.mxu0 0.0
    %171 = vmatprep.subr.mxu0 0.0
    %172 = vmatpush2.msra.mxu0 0.0
    %173 = vmatprep.subr.mxu0 0.0
    %174 = vmatpush2.msra.mxu0 0.0
    %175 = vmatprep.subr.mxu0 0.0
    %176 = vmatpush2.msra.mxu0 0.0
    %177 = vmatprep.subr.mxu0 0.0
    %178 = vmatpush2.msra.mxu0 0.0
    %179 = vmatprep.subr.mxu0 0.0
    %180 = vmatpush2.msra.mxu0 0.0
    %181 = vmatprep.mubr.f32.mxu0 0.0
    %182 = vmatmul.mubr.f32.gmra.mxu0 %v115
    %v183 = vpop.f32.mrf.mxu0
    %v184 = vadd.f32 0.0, %v183
    %v185 = vpop.f32.mrf.mxu0
    %186 = vdwg.mxu0
    %v187 = vadd.f32 %v111, %v184
    %v188 = vxor.u32 %v187, 2147483648
    %v189 = vmul.f32 %v188, 1.442695
    %v190 = vpow.pop %v189
    %v191 = vadd.f32 %v190, 1.0
    %v192 = vrcp.pop %v191
    %v193 = vmul.f32 1.0, %v192
    %v194 = vtanh.pop %v187
    %v195 = vmul.f32 %v193, 0.0
    %197 = vrot.lane.b32.xlu0 %v194, 64
    %v198 = vpop.permute.xlu0 %197
    %v200 = vmul.f32 %v193, %v198
    %202 = vrot.lane.b32.xlu0 %v200, 32
    %v203 = vpop.permute.xlu0 %202
    %v205 = vadd.f32 %v195, %v203
    %v206 = vtanh.pop %v205
    %208 = vrot.lane.b32.xlu0 %v206, 64
    %v209 = vpop.permute.xlu0 %208
    %v211 = vmul.f32 %v193, %v209
    %213 = vrot.lane.b32.xlu0 %v211, 32
    %v214 = vpop.permute.xlu0 %213
    %vm216 = vcmask 253952
    %217 = vst.msk [vmem:[#allocation2] sm:$0x1] %vm216, %v214
    %v218 = vsel %vm40, %v214, 0
    %220 = vmatprep.subr.mxu0 0.0
    %221 = vmatpush1.msra.mxu0 0.0
    %222 = vmatprep.subr.mxu0 0.0
    %223 = vmatpush1.msra.mxu0 0.0
    %224 = vmatprep.subr.mxu0 0.0
    %225 = vmatpush1.msra.mxu0 0.0
    %226 = vmatprep.subr.mxu0 0.0
    %227 = vmatpush1.msra.mxu0 0.0
    %228 = vmatprep.subr.mxu0 0.0
    %229 = vmatpush1.msra.mxu0 0.0
    %230 = vmatprep.subr.mxu0 0.0
    %231 = vmatpush1.msra.mxu0 0.0
    %232 = vmatprep.subr.mxu0 0.0
    %233 = vmatpush1.msra.mxu0 0.0
    %234 = vmatprep.subr.mxu0 0.0
    %235 = vmatpush1.msra.mxu0 0.0
    %236 = vmatprep.subr.mxu0 0.0
    %237 = vmatpush1.msra.mxu0 0.0
    %238 = vmatprep.subr.mxu0 0.0
    %239 = vmatpush1.msra.mxu0 0.0
    %240 = vmatprep.subr.mxu0 0.0
    %241 = vmatpush1.msra.mxu0 0.0
    %242 = vmatprep.subr.mxu0 0.0
    %243 = vmatpush1.msra.mxu0 0.0
    %244 = vmatprep.subr.mxu0 0.0
    %245 = vmatpush1.msra.mxu0 %v27
    %246 = vmatprep.subr.mxu0 0.0
    %247 = vmatpush1.msra.mxu0 %v26
    %248 = vmatprep.subr.mxu0 0.0
    %249 = vmatpush1.msra.mxu0 %v25
    %250 = vmatprep.subr.mxu0 0.0
    %251 = vmatpush1.msra.mxu0 %v24
    %252 = vmatprep.subr.mxu0 0.0
    %253 = vmatpush2.msra.mxu0 0.0
    %254 = vmatprep.subr.mxu0 0.0
    %255 = vmatpush2.msra.mxu0 0.0
    %256 = vmatprep.subr.mxu0 0.0
    %257 = vmatpush2.msra.mxu0 0.0
    %258 = vmatprep.subr.mxu0 0.0
    %259 = vmatpush2.msra.mxu0 0.0
    %260 = vmatprep.subr.mxu0 0.0
    %261 = vmatpush2.msra.mxu0 0.0
    %262 = vmatprep.subr.mxu0 0.0
    %263 = vmatpush2.msra.mxu0 0.0
    %264 = vmatprep.subr.mxu0 0.0
    %265 = vmatpush2.msra.mxu0 0.0
    %266 = vmatprep.subr.mxu0 0.0
    %267 = vmatpush2.msra.mxu0 0.0
    %268 = vmatprep.subr.mxu0 0.0
    %269 = vmatpush2.msra.mxu0 0.0
    %270 = vmatprep.subr.mxu0 0.0
    %271 = vmatpush2.msra.mxu0 0.0
    %272 = vmatprep.subr.mxu0 0.0
    %273 = vmatpush2.msra.mxu0 0.0
    %274 = vmatprep.subr.mxu0 0.0
    %275 = vmatpush2.msra.mxu0 0.0
    %276 = vmatprep.subr.mxu0 0.0
    %277 = vmatpush2.msra.mxu0 0.0
    %278 = vmatprep.subr.mxu0 0.0
    %279 = vmatpush2.msra.mxu0 0.0
    %280 = vmatprep.subr.mxu0 0.0
    %281 = vmatpush2.msra.mxu0 0.0
    %282 = vmatprep.subr.mxu0 0.0
    %283 = vmatpush2.msra.mxu0 0.0
    %284 = vmatprep.mubr.f32.mxu0 0.0
    %285 = vmatmul.mubr.f32.gmra.mxu0 %v218
    %v286 = vpop.f32.mrf.mxu0
    %v287 = vadd.f32 0.0, %v286
    %v288 = vpop.f32.mrf.mxu0
    %289 = vdwg.mxu0
    %v291 = vrot.slane %v287, 7
    %v293 = vadd.f32 %v111, %v291
    %v294 = vxor.u32 %v293, 2147483648
    %v295 = vmul.f32 %v294, 1.442695
    %v296 = vpow.pop %v295
    %v297 = vadd.f32 %v296, 1.0
    %v298 = vrcp.pop %v297
    %v299 = vmul.f32 1.0, %v298
    %v300 = vtanh.pop %v293
    %v302 = vrot.slane %v205, 7
    %v304 = vmul.f32 %v299, %v302
    %306 = vrot.lane.b32.xlu0 %v300, 64
    %v307 = vpop.permute.xlu0 %306
    %v309 = vmul.f32 %v299, %v307
    %311 = vrot.lane.b32.xlu0 %v309, 32
    %v312 = vpop.permute.xlu0 %311
    %v314 = vadd.f32 %v304, %v312
    %v315 = vtanh.pop %v314
    %317 = vrot.lane.b32.xlu0 %v315, 64
    %v318 = vpop.permute.xlu0 %317
    %v320 = vmul.f32 %v299, %v318
    %322 = vrot.lane.b32.xlu0 %v320, 32
    %v323 = vpop.permute.xlu0 %322
    %vm325 = vcmask 254977
    %326 = vst.msk [vmem:[#allocation2] sm:$0x2] %vm325, %v323
    %v327 = vrot.slane %v320, 1
    %328 = vrot.lane.b32.xlu0 %v327, 32
    %v329 = vpop.permute.xlu0 %328
    %v330 = vsel %vm40, %v329, 0
    %332 = vmatprep.subr.mxu0 0.0
    %333 = vmatpush1.msra.mxu0 0.0
    %334 = vmatprep.subr.mxu0 0.0
    %335 = vmatpush1.msra.mxu0 0.0
    %336 = vmatprep.subr.mxu0 0.0
    %337 = vmatpush1.msra.mxu0 0.0
    %338 = vmatprep.subr.mxu0 0.0
    %339 = vmatpush1.msra.mxu0 0.0
    %340 = vmatprep.subr.mxu0 0.0
    %341 = vmatpush1.msra.mxu0 0.0
    %342 = vmatprep.subr.mxu0 0.0
    %343 = vmatpush1.msra.mxu0 0.0
    %344 = vmatprep.subr.mxu0 0.0
    %345 = vmatpush1.msra.mxu0 0.0
    %346 = vmatprep.subr.mxu0 0.0
    %347 = vmatpush1.msra.mxu0 0.0
    %348 = vmatprep.subr.mxu0 0.0
    %349 = vmatpush1.msra.mxu0 0.0
    %350 = vmatprep.subr.mxu0 0.0
    %351 = vmatpush1.msra.mxu0 0.0
    %352 = vmatprep.subr.mxu0 0.0
    %353 = vmatpush1.msra.mxu0 0.0
    %354 = vmatprep.subr.mxu0 0.0
    %355 = vmatpush1.msra.mxu0 0.0
    %356 = vmatprep.subr.mxu0 0.0
    %357 = vmatpush1.msra.mxu0 %v27
    %358 = vmatprep.subr.mxu0 0.0
    %359 = vmatpush1.msra.mxu0 %v26
    %360 = vmatprep.subr.mxu0 0.0
    %361 = vmatpush1.msra.mxu0 %v25
    %362 = vmatprep.subr.mxu0 0.0
    %363 = vmatpush1.msra.mxu0 %v24
    %364 = vmatprep.subr.mxu0 0.0
    %365 = vmatpush2.msra.mxu0 0.0
    %366 = vmatprep.subr.mxu0 0.0
    %367 = vmatpush2.msra.mxu0 0.0
    %368 = vmatprep.subr.mxu0 0.0
    %369 = vmatpush2.msra.mxu0 0.0
    %370 = vmatprep.subr.mxu0 0.0
    %371 = vmatpush2.msra.mxu0 0.0
    %372 = vmatprep.subr.mxu0 0.0
    %373 = vmatpush2.msra.mxu0 0.0
    %374 = vmatprep.subr.mxu0 0.0
    %375 = vmatpush2.msra.mxu0 0.0
    %376 = vmatprep.subr.mxu0 0.0
    %377 = vmatpush2.msra.mxu0 0.0
    %378 = vmatprep.subr.mxu0 0.0
    %379 = vmatpush2.msra.mxu0 0.0
    %380 = vmatprep.subr.mxu0 0.0
    %381 = vmatpush2.msra.mxu0 0.0
    %382 = vmatprep.subr.mxu0 0.0
    %383 = vmatpush2.msra.mxu0 0.0
    %384 = vmatprep.subr.mxu0 0.0
    %385 = vmatpush2.msra.mxu0 0.0
    %386 = vmatprep.subr.mxu0 0.0
    %387 = vmatpush2.msra.mxu0 0.0
    %388 = vmatprep.subr.mxu0 0.0
    %389 = vmatpush2.msra.mxu0 0.0
    %390 = vmatprep.subr.mxu0 0.0
    %391 = vmatpush2.msra.mxu0 0.0
    %392 = vmatprep.subr.mxu0 0.0
    %393 = vmatpush2.msra.mxu0 0.0
    %394 = vmatprep.subr.mxu0 0.0
    %395 = vmatpush2.msra.mxu0 0.0
    %396 = vmatprep.mubr.f32.mxu0 0.0
    %397 = vmatmul.mubr.f32.gmra.mxu0 %v330
    %v398 = vpop.f32.mrf.mxu0
    %v399 = vadd.f32 0.0, %v398
    %v400 = vpop.f32.mrf.mxu0
    %401 = vdwg.mxu0
    %v403 = vrot.slane %v399, 6
    %v405 = vadd.f32 %v111, %v403
    %v406 = vxor.u32 %v405, 2147483648
    %v407 = vmul.f32 %v406, 1.442695
    %v408 = vpow.pop %v407
    %v409 = vadd.f32 %v408, 1.0
    %v410 = vrcp.pop %v409
    %v411 = vmul.f32 1.0, %v410
    %v412 = vtanh.pop %v405
    %v414 = vrot.slane %v314, 7
    %v416 = vmul.f32 %v411, %v414
    %418 = vrot.lane.b32.xlu0 %v412, 64
    %v419 = vpop.permute.xlu0 %418
    %v421 = vmul.f32 %v411, %v419
    %423 = vrot.lane.b32.xlu0 %v421, 32
    %v424 = vpop.permute.xlu0 %423
    %v426 = vadd.f32 %v416, %v424
    %v427 = vtanh.pop %v426
    %429 = vrot.lane.b32.xlu0 %v427, 64
    %v430 = vpop.permute.xlu0 %429
    %v432 = vmul.f32 %v411, %v430
    %434 = vrot.lane.b32.xlu0 %v432, 32
    %v435 = vpop.permute.xlu0 %434
    %vm437 = vcmask 256002
    %438 = vst.msk [vmem:[#allocation2] sm:$0x4] %vm437, %v435
    %v439 = vrot.slane %v432, 2
    %440 = vrot.lane.b32.xlu0 %v439, 32
    %v441 = vpop.permute.xlu0 %440
    %v442 = vsel %vm40, %v441, 0
    %444 = vmatprep.subr.mxu0 0.0
    %445 = vmatpush1.msra.mxu0 0.0
    %446 = vmatprep.subr.mxu0 0.0
    %447 = vmatpush1.msra.mxu0 0.0
    %448 = vmatprep.subr.mxu0 0.0
    %449 = vmatpush1.msra.mxu0 0.0
    %450 = vmatprep.subr.mxu0 0.0
    %451 = vmatpush1.msra.mxu0 0.0
    %452 = vmatprep.subr.mxu0 0.0
    %453 = vmatpush1.msra.mxu0 0.0
    %454 = vmatprep.subr.mxu0 0.0
    %455 = vmatpush1.msra.mxu0 0.0
    %456 = vmatprep.subr.mxu0 0.0
    %457 = vmatpush1.msra.mxu0 0.0
    %458 = vmatprep.subr.mxu0 0.0
    %459 = vmatpush1.msra.mxu0 0.0
    %460 = vmatprep.subr.mxu0 0.0
    %461 = vmatpush1.msra.mxu0 0.0
    %462 = vmatprep.subr.mxu0 0.0
    %463 = vmatpush1.msra.mxu0 0.0
    %464 = vmatprep.subr.mxu0 0.0
    %465 = vmatpush1.msra.mxu0 0.0
    %466 = vmatprep.subr.mxu0 0.0
    %467 = vmatpush1.msra.mxu0 0.0
    %468 = vmatprep.subr.mxu0 0.0
    %469 = vmatpush1.msra.mxu0 %v27
    %470 = vmatprep.subr.mxu0 0.0
    %471 = vmatpush1.msra.mxu0 %v26
    %472 = vmatprep.subr.mxu0 0.0
    %473 = vmatpush1.msra.mxu0 %v25
    %474 = vmatprep.subr.mxu0 0.0
    %475 = vmatpush1.msra.mxu0 %v24
    %476 = vmatprep.subr.mxu0 0.0
    %477 = vmatpush2.msra.mxu0 0.0
    %478 = vmatprep.subr.mxu0 0.0
    %479 = vmatpush2.msra.mxu0 0.0
    %480 = vmatprep.subr.mxu0 0.0
    %481 = vmatpush2.msra.mxu0 0.0
    %482 = vmatprep.subr.mxu0 0.0
    %483 = vmatpush2.msra.mxu0 0.0
    %484 = vmatprep.subr.mxu0 0.0
    %485 = vmatpush2.msra.mxu0 0.0
    %486 = vmatprep.subr.mxu0 0.0
    %487 = vmatpush2.msra.mxu0 0.0
    %488 = vmatprep.subr.mxu0 0.0
    %489 = vmatpush2.msra.mxu0 0.0
    %490 = vmatprep.subr.mxu0 0.0
    %491 = vmatpush2.msra.mxu0 0.0
    %492 = vmatprep.subr.mxu0 0.0
    %493 = vmatpush2.msra.mxu0 0.0
    %494 = vmatprep.subr.mxu0 0.0
    %495 = vmatpush2.msra.mxu0 0.0
    %496 = vmatprep.subr.mxu0 0.0
    %497 = vmatpush2.msra.mxu0 0.0
    %498 = vmatprep.subr.mxu0 0.0
    %499 = vmatpush2.msra.mxu0 0.0
    %500 = vmatprep.subr.mxu0 0.0
    %501 = vmatpush2.msra.mxu0 0.0
    %502 = vmatprep.subr.mxu0 0.0
    %503 = vmatpush2.msra.mxu0 0.0
    %504 = vmatprep.subr.mxu0 0.0
    %505 = vmatpush2.msra.mxu0 0.0
    %506 = vmatprep.subr.mxu0 0.0
    %507 = vmatpush2.msra.mxu0 0.0
    %508 = vmatprep.mubr.f32.mxu0 0.0
    %509 = vmatmul.mubr.f32.gmra.mxu0 %v442
    %v510 = vpop.f32.mrf.mxu0
    %v511 = vadd.f32 0.0, %v510
    %v512 = vpop.f32.mrf.mxu0
    %513 = vdwg.mxu0
    %v515 = vrot.slane %v511, 5
    %v517 = vadd.f32 %v111, %v515
    %v518 = vxor.u32 %v517, 2147483648
    %v519 = vmul.f32 %v518, 1.442695
    %v520 = vpow.pop %v519
    %v521 = vadd.f32 %v520, 1.0
    %v522 = vrcp.pop %v521
    %v523 = vmul.f32 1.0, %v522
    %v524 = vtanh.pop %v517
    %v526 = vrot.slane %v426, 7
    %v528 = vmul.f32 %v523, %v526
    %530 = vrot.lane.b32.xlu0 %v524, 64
    %v531 = vpop.permute.xlu0 %530
    %v533 = vmul.f32 %v523, %v531
    %535 = vrot.lane.b32.xlu0 %v533, 32
    %v536 = vpop.permute.xlu0 %535
    %v538 = vadd.f32 %v528, %v536
    %v539 = vtanh.pop %v538
    %541 = vrot.lane.b32.xlu0 %v539, 64
    %v542 = vpop.permute.xlu0 %541
    %v544 = vmul.f32 %v523, %v542
    %546 = vrot.lane.b32.xlu0 %v544, 32
    %v547 = vpop.permute.xlu0 %546
    %vm549 = vcmask 257027
    %550 = vst.msk [vmem:[#allocation2] sm:$0x8] %vm549, %v547
    %v551 = vrot.slane %v544, 3
    %552 = vrot.lane.b32.xlu0 %v551, 32
    %v553 = vpop.permute.xlu0 %552
    %v554 = vsel %vm40, %v553, 0
    %556 = vmatprep.subr.mxu0 0.0
    %557 = vmatpush1.msra.mxu0 0.0
    %558 = vmatprep.subr.mxu0 0.0
    %559 = vmatpush1.msra.mxu0 0.0
    %560 = vmatprep.subr.mxu0 0.0
    %561 = vmatpush1.msra.mxu0 0.0
    %562 = vmatprep.subr.mxu0 0.0
    %563 = vmatpush1.msra.mxu0 0.0
    %564 = vmatprep.subr.mxu0 0.0
    %565 = vmatpush1.msra.mxu0 0.0
    %566 = vmatprep.subr.mxu0 0.0
    %567 = vmatpush1.msra.mxu0 0.0
    %568 = vmatprep.subr.mxu0 0.0
    %569 = vmatpush1.msra.mxu0 0.0
    %570 = vmatprep.subr.mxu0 0.0
    %571 = vmatpush1.msra.mxu0 0.0
    %572 = vmatprep.subr.mxu0 0.0
    %573 = vmatpush1.msra.mxu0 0.0
    %574 = vmatprep.subr.mxu0 0.0
    %575 = vmatpush1.msra.mxu0 0.0
    %576 = vmatprep.subr.mxu0 0.0
    %577 = vmatpush1.msra.mxu0 0.0
    %578 = vmatprep.subr.mxu0 0.0
    %579 = vmatpush1.msra.mxu0 0.0
    %580 = vmatprep.subr.mxu0 0.0
    %581 = vmatpush1.msra.mxu0 %v27
    %582 = vmatprep.subr.mxu0 0.0
    %583 = vmatpush1.msra.mxu0 %v26
    %584 = vmatprep.subr.mxu0 0.0
    %585 = vmatpush1.msra.mxu0 %v25
    %586 = vmatprep.subr.mxu0 0.0
    %587 = vmatpush1.msra.mxu0 %v24
    %588 = vmatprep.subr.mxu0 0.0
    %589 = vmatpush2.msra.mxu0 0.0
    %590 = vmatprep.subr.mxu0 0.0
    %591 = vmatpush2.msra.mxu0 0.0
    %592 = vmatprep.subr.mxu0 0.0
    %593 = vmatpush2.msra.mxu0 0.0
    %594 = vmatprep.subr.mxu0 0.0
    %595 = vmatpush2.msra.mxu0 0.0
    %596 = vmatprep.subr.mxu0 0.0
    %597 = vmatpush2.msra.mxu0 0.0
    %598 = vmatprep.subr.mxu0 0.0
    %599 = vmatpush2.msra.mxu0 0.0
    %600 = vmatprep.subr.mxu0 0.0
    %601 = vmatpush2.msra.mxu0 0.0
    %602 = vmatprep.subr.mxu0 0.0
    %603 = vmatpush2.msra.mxu0 0.0
    %604 = vmatprep.subr.mxu0 0.0
    %605 = vmatpush2.msra.mxu0 0.0
    %606 = vmatprep.subr.mxu0 0.0
    %607 = vmatpush2.msra.mxu0 0.0
    %608 = vmatprep.subr.mxu0 0.0
    %609 = vmatpush2.msra.mxu0 0.0
    %610 = vmatprep.subr.mxu0 0.0
    %611 = vmatpush2.msra.mxu0 0.0
    %612 = vmatprep.subr.mxu0 0.0
    %613 = vmatpush2.msra.mxu0 0.0
    %614 = vmatprep.subr.mxu0 0.0
    %615 = vmatpush2.msra.mxu0 0.0
    %616 = vmatprep.subr.mxu0 0.0
    %617 = vmatpush2.msra.mxu0 0.0
    %618 = vmatprep.subr.mxu0 0.0
    %619 = vmatpush2.msra.mxu0 0.0
    %620 = vmatprep.mubr.f32.mxu0 0.0
    %621 = vmatmul.mubr.f32.gmra.mxu0 %v554
    %v622 = vpop.f32.mrf.mxu0
    %v623 = vadd.f32 0.0, %v622
    %v624 = vpop.f32.mrf.mxu0
    %625 = vdwg.mxu0
    %v627 = vrot.slane %v623, 4
    %v629 = vadd.f32 %v111, %v627
    %v630 = vxor.u32 %v629, 2147483648
    %v631 = vmul.f32 %v630, 1.442695
    %v632 = vpow.pop %v631
    %v633 = vadd.f32 %v632, 1.0
    %v634 = vrcp.pop %v633
    %v635 = vmul.f32 1.0, %v634
    %v636 = vtanh.pop %v629
    %v638 = vrot.slane %v538, 7
    %v640 = vmul.f32 %v635, %v638
    %642 = vrot.lane.b32.xlu0 %v636, 64
    %v643 = vpop.permute.xlu0 %642
    %v645 = vmul.f32 %v635, %v643
    %647 = vrot.lane.b32.xlu0 %v645, 32
    %v648 = vpop.permute.xlu0 %647
    %v650 = vadd.f32 %v640, %v648
    %v651 = vtanh.pop %v650
    %653 = vrot.lane.b32.xlu0 %v651, 64
    %v654 = vpop.permute.xlu0 %653
    %v656 = vmul.f32 %v635, %v654
    %658 = vrot.lane.b32.xlu0 %v656, 32
    %v659 = vpop.permute.xlu0 %658
    %vm661 = vcmask 258052
    %662 = vst.msk [vmem:[#allocation2] sm:$0x10] %vm661, %v659
    %v663 = vrot.slane %v656, 4
    %664 = vrot.lane.b32.xlu0 %v663, 32
    %v665 = vpop.permute.xlu0 %664
    %v666 = vsel %vm40, %v665, 0
    %668 = vmatprep.subr.mxu0 0.0
    %669 = vmatpush1.msra.mxu0 0.0
    %670 = vmatprep.subr.mxu0 0.0
    %671 = vmatpush1.msra.mxu0 0.0
    %672 = vmatprep.subr.mxu0 0.0
    %673 = vmatpush1.msra.mxu0 0.0
    %674 = vmatprep.subr.mxu0 0.0
    %675 = vmatpush1.msra.mxu0 0.0
    %676 = vmatprep.subr.mxu0 0.0
    %677 = vmatpush1.msra.mxu0 0.0
    %678 = vmatprep.subr.mxu0 0.0
    %679 = vmatpush1.msra.mxu0 0.0
    %680 = vmatprep.subr.mxu0 0.0
    %681 = vmatpush1.msra.mxu0 0.0
    %682 = vmatprep.subr.mxu0 0.0
    %683 = vmatpush1.msra.mxu0 0.0
    %684 = vmatprep.subr.mxu0 0.0
    %685 = vmatpush1.msra.mxu0 0.0
    %686 = vmatprep.subr.mxu0 0.0
    %687 = vmatpush1.msra.mxu0 0.0
    %688 = vmatprep.subr.mxu0 0.0
    %689 = vmatpush1.msra.mxu0 0.0
    %690 = vmatprep.subr.mxu0 0.0
    %691 = vmatpush1.msra.mxu0 0.0
    %692 = vmatprep.subr.mxu0 0.0
    %693 = vmatpush1.msra.mxu0 %v27
    %694 = vmatprep.subr.mxu0 0.0
    %695 = vmatpush1.msra.mxu0 %v26
    %696 = vmatprep.subr.mxu0 0.0
    %697 = vmatpush1.msra.mxu0 %v25
    %698 = vmatprep.subr.mxu0 0.0
    %699 = vmatpush1.msra.mxu0 %v24
    %700 = vmatprep.subr.mxu0 0.0
    %701 = vmatpush2.msra.mxu0 0.0
    %702 = vmatprep.subr.mxu0 0.0
    %703 = vmatpush2.msra.mxu0 0.0
    %704 = vmatprep.subr.mxu0 0.0
    %705 = vmatpush2.msra.mxu0 0.0
    %706 = vmatprep.subr.mxu0 0.0
    %707 = vmatpush2.msra.mxu0 0.0
    %708 = vmatprep.subr.mxu0 0.0
    %709 = vmatpush2.msra.mxu0 0.0
    %710 = vmatprep.subr.mxu0 0.0
    %711 = vmatpush2.msra.mxu0 0.0
    %712 = vmatprep.subr.mxu0 0.0
    %713 = vmatpush2.msra.mxu0 0.0
    %714 = vmatprep.subr.mxu0 0.0
    %715 = vmatpush2.msra.mxu0 0.0
    %716 = vmatprep.subr.mxu0 0.0
    %717 = vmatpush2.msra.mxu0 0.0
    %718 = vmatprep.subr.mxu0 0.0
    %719 = vmatpush2.msra.mxu0 0.0
    %720 = vmatprep.subr.mxu0 0.0
    %721 = vmatpush2.msra.mxu0 0.0
    %722 = vmatprep.subr.mxu0 0.0
    %723 = vmatpush2.msra.mxu0 0.0
    %724 = vmatprep.subr.mxu0 0.0
    %725 = vmatpush2.msra.mxu0 0.0
    %726 = vmatprep.subr.mxu0 0.0
    %727 = vmatpush2.msra.mxu0 0.0
    %728 = vmatprep.subr.mxu0 0.0
    %729 = vmatpush2.msra.mxu0 0.0
    %730 = vmatprep.subr.mxu0 0.0
    %731 = vmatpush2.msra.mxu0 0.0
    %732 = vmatprep.mubr.f32.mxu0 0.0
    %733 = vmatmul.mubr.f32.gmra.mxu0 %v666
    %v734 = vpop.f32.mrf.mxu0
    %v735 = vadd.f32 0.0, %v734
    %v736 = vpop.f32.mrf.mxu0
    %737 = vdwg.mxu0
    %v739 = vrot.slane %v735, 3
    %v741 = vadd.f32 %v111, %v739
    %v742 = vxor.u32 %v741, 2147483648
    %v743 = vmul.f32 %v742, 1.442695
    %v744 = vpow.pop %v743
    %v745 = vadd.f32 %v744, 1.0
    %v746 = vrcp.pop %v745
    %v747 = vmul.f32 1.0, %v746
    %v748 = vtanh.pop %v741
    %v750 = vrot.slane %v650, 7
    %v752 = vmul.f32 %v747, %v750
    %754 = vrot.lane.b32.xlu0 %v748, 64
    %v755 = vpop.permute.xlu0 %754
    %v757 = vmul.f32 %v747, %v755
    %759 = vrot.lane.b32.xlu0 %v757, 32
    %v760 = vpop.permute.xlu0 %759
    %v762 = vadd.f32 %v752, %v760
    %v763 = vtanh.pop %v762
    %765 = vrot.lane.b32.xlu0 %v763, 64
    %v766 = vpop.permute.xlu0 %765
    %v768 = vmul.f32 %v747, %v766
    %770 = vrot.lane.b32.xlu0 %v768, 32
    %v771 = vpop.permute.xlu0 %770
    %vm773 = vcmask 259077
    %774 = vst.msk [vmem:[#allocation2] sm:$0x20] %vm773, %v771
    %v775 = vrot.slane %v768, 5
    %776 = vrot.lane.b32.xlu0 %v775, 32
    %v777 = vpop.permute.xlu0 %776
    %v778 = vsel %vm40, %v777, 0
    %780 = vmatprep.subr.mxu0 0.0
    %781 = vmatpush1.msra.mxu0 0.0
    %782 = vmatprep.subr.mxu0 0.0
    %783 = vmatpush1.msra.mxu0 0.0
    %784 = vmatprep.subr.mxu0 0.0
    %785 = vmatpush1.msra.mxu0 0.0
    %786 = vmatprep.subr.mxu0 0.0
    %787 = vmatpush1.msra.mxu0 0.0
    %788 = vmatprep.subr.mxu0 0.0
    %789 = vmatpush1.msra.mxu0 0.0
    %790 = vmatprep.subr.mxu0 0.0
    %791 = vmatpush1.msra.mxu0 0.0
    %792 = vmatprep.subr.mxu0 0.0
    %793 = vmatpush1.msra.mxu0 0.0
    %794 = vmatprep.subr.mxu0 0.0
    %795 = vmatpush1.msra.mxu0 0.0
    %796 = vmatprep.subr.mxu0 0.0
    %797 = vmatpush1.msra.mxu0 0.0
    %798 = vmatprep.subr.mxu0 0.0
    %799 = vmatpush1.msra.mxu0 0.0
    %800 = vmatprep.subr.mxu0 0.0
    %801 = vmatpush1.msra.mxu0 0.0
    %802 = vmatprep.subr.mxu0 0.0
    %803 = vmatpush1.msra.mxu0 0.0
    %804 = vmatprep.subr.mxu0 0.0
    %805 = vmatpush1.msra.mxu0 %v27
    %806 = vmatprep.subr.mxu0 0.0
    %807 = vmatpush1.msra.mxu0 %v26
    %808 = vmatprep.subr.mxu0 0.0
    %809 = vmatpush1.msra.mxu0 %v25
    %810 = vmatprep.subr.mxu0 0.0
    %811 = vmatpush1.msra.mxu0 %v24
    %812 = vmatprep.subr.mxu0 0.0
    %813 = vmatpush2.msra.mxu0 0.0
    %814 = vmatprep.subr.mxu0 0.0
    %815 = vmatpush2.msra.mxu0 0.0
    %816 = vmatprep.subr.mxu0 0.0
    %817 = vmatpush2.msra.mxu0 0.0
    %818 = vmatprep.subr.mxu0 0.0
    %819 = vmatpush2.msra.mxu0 0.0
    %820 = vmatprep.subr.mxu0 0.0
    %821 = vmatpush2.msra.mxu0 0.0
    %822 = vmatprep.subr.mxu0 0.0
    %823 = vmatpush2.msra.mxu0 0.0
    %824 = vmatprep.subr.mxu0 0.0
    %825 = vmatpush2.msra.mxu0 0.0
    %826 = vmatprep.subr.mxu0 0.0
    %827 = vmatpush2.msra.mxu0 0.0
    %828 = vmatprep.subr.mxu0 0.0
    %829 = vmatpush2.msra.mxu0 0.0
    %830 = vmatprep.subr.mxu0 0.0
    %831 = vmatpush2.msra.mxu0 0.0
    %832 = vmatprep.subr.mxu0 0.0
    %833 = vmatpush2.msra.mxu0 0.0
    %834 = vmatprep.subr.mxu0 0.0
    %835 = vmatpush2.msra.mxu0 0.0
    %836 = vmatprep.subr.mxu0 0.0
    %837 = vmatpush2.msra.mxu0 0.0
    %838 = vmatprep.subr.mxu0 0.0
    %839 = vmatpush2.msra.mxu0 0.0
    %840 = vmatprep.subr.mxu0 0.0
    %841 = vmatpush2.msra.mxu0 0.0
    %842 = vmatprep.subr.mxu0 0.0
    %843 = vmatpush2.msra.mxu0 0.0
    %844 = vmatprep.mubr.f32.mxu0 0.0
    %845 = vmatmul.mubr.f32.gmra.mxu0 %v778
    %v846 = vpop.f32.mrf.mxu0
    %v847 = vadd.f32 0.0, %v846
    %v848 = vpop.f32.mrf.mxu0
    %849 = vdwg.mxu0
    %v851 = vrot.slane %v847, 2
    %v853 = vadd.f32 %v111, %v851
    %v854 = vxor.u32 %v853, 2147483648
    %v855 = vmul.f32 %v854, 1.442695
    %v856 = vpow.pop %v855
    %v857 = vadd.f32 %v856, 1.0
    %v858 = vrcp.pop %v857
    %v859 = vmul.f32 1.0, %v858
    %v860 = vtanh.pop %v853
    %v862 = vrot.slane %v762, 7
    %v864 = vmul.f32 %v859, %v862
    %866 = vrot.lane.b32.xlu0 %v860, 64
    %v867 = vpop.permute.xlu0 %866
    %v869 = vmul.f32 %v859, %v867
    %871 = vrot.lane.b32.xlu0 %v869, 32
    %v872 = vpop.permute.xlu0 %871
    %v874 = vadd.f32 %v864, %v872
    %v875 = vtanh.pop %v874
    %877 = vrot.lane.b32.xlu0 %v875, 64
    %v878 = vpop.permute.xlu0 %877
    %v880 = vmul.f32 %v859, %v878
    %882 = vrot.lane.b32.xlu0 %v880, 32
    %v883 = vpop.permute.xlu0 %882
    %vm885 = vcmask 260102
    %886 = vst.msk [vmem:[#allocation2] sm:$0x40] %vm885, %v883
    %v887 = vrot.slane %v880, 6
    %888 = vrot.lane.b32.xlu0 %v887, 32
    %v889 = vpop.permute.xlu0 %888
    %v890 = vsel %vm40, %v889, 0
    %892 = vmatprep.subr.mxu0 0.0
    %893 = vmatpush1.msra.mxu0 0.0
    %894 = vmatprep.subr.mxu0 0.0
    %895 = vmatpush1.msra.mxu0 0.0
    %896 = vmatprep.subr.mxu0 0.0
    %897 = vmatpush1.msra.mxu0 0.0
    %898 = vmatprep.subr.mxu0 0.0
    %899 = vmatpush1.msra.mxu0 0.0
    %900 = vmatprep.subr.mxu0 0.0
    %901 = vmatpush1.msra.mxu0 0.0
    %902 = vmatprep.subr.mxu0 0.0
    %903 = vmatpush1.msra.mxu0 0.0
    %904 = vmatprep.subr.mxu0 0.0
    %905 = vmatpush1.msra.mxu0 0.0
    %906 = vmatprep.subr.mxu0 0.0
    %907 = vmatpush1.msra.mxu0 0.0
    %908 = vmatprep.subr.mxu0 0.0
    %909 = vmatpush1.msra.mxu0 0.0
    %910 = vmatprep.subr.mxu0 0.0
    %911 = vmatpush1.msra.mxu0 0.0
    %912 = vmatprep.subr.mxu0 0.0
    %913 = vmatpush1.msra.mxu0 0.0
    %914 = vmatprep.subr.mxu0 0.0
    %915 = vmatpush1.msra.mxu0 0.0
    %916 = vmatprep.subr.mxu0 0.0
    %917 = vmatpush1.msra.mxu0 %v27
    %918 = vmatprep.subr.mxu0 0.0
    %919 = vmatpush1.msra.mxu0 %v26
    %920 = vmatprep.subr.mxu0 0.0
    %921 = vmatpush1.msra.mxu0 %v25
    %922 = vmatprep.subr.mxu0 0.0
    %923 = vmatpush1.msra.mxu0 %v24
    %924 = vmatprep.subr.mxu0 0.0
    %925 = vmatpush2.msra.mxu0 0.0
    %926 = vmatprep.subr.mxu0 0.0
    %927 = vmatpush2.msra.mxu0 0.0
    %928 = vmatprep.subr.mxu0 0.0
    %929 = vmatpush2.msra.mxu0 0.0
    %930 = vmatprep.subr.mxu0 0.0
    %931 = vmatpush2.msra.mxu0 0.0
    %932 = vmatprep.subr.mxu0 0.0
    %933 = vmatpush2.msra.mxu0 0.0
    %934 = vmatprep.subr.mxu0 0.0
    %935 = vmatpush2.msra.mxu0 0.0
    %936 = vmatprep.subr.mxu0 0.0
    %937 = vmatpush2.msra.mxu0 0.0
    %938 = vmatprep.subr.mxu0 0.0
    %939 = vmatpush2.msra.mxu0 0.0
    %940 = vmatprep.subr.mxu0 0.0
    %941 = vmatpush2.msra.mxu0 0.0
    %942 = vmatprep.subr.mxu0 0.0
    %943 = vmatpush2.msra.mxu0 0.0
    %944 = vmatprep.subr.mxu0 0.0
    %945 = vmatpush2.msra.mxu0 0.0
    %946 = vmatprep.subr.mxu0 0.0
    %947 = vmatpush2.msra.mxu0 0.0
    %948 = vmatprep.subr.mxu0 0.0
    %949 = vmatpush2.msra.mxu0 0.0
    %950 = vmatprep.subr.mxu0 0.0
    %951 = vmatpush2.msra.mxu0 0.0
    %952 = vmatprep.subr.mxu0 0.0
    %953 = vmatpush2.msra.mxu0 0.0
    %954 = vmatprep.subr.mxu0 0.0
    %955 = vmatpush2.msra.mxu0 0.0
    %956 = vmatprep.mubr.f32.mxu0 0.0
    %957 = vmatmul.mubr.f32.gmra.mxu0 %v890
    %v958 = vpop.f32.mrf.mxu0
    %v959 = vadd.f32 0.0, %v958
    %v960 = vpop.f32.mrf.mxu0
    %961 = vdwg.mxu0
    %v963 = vrot.slane %v959, 1
    %v965 = vadd.f32 %v111, %v963
    %v966 = vxor.u32 %v965, 2147483648
    %v967 = vmul.f32 %v966, 1.442695
    %v968 = vpow.pop %v967
    %v969 = vadd.f32 %v968, 1.0
    %v970 = vrcp.pop %v969
    %v971 = vmul.f32 1.0, %v970
    %v972 = vtanh.pop %v965
    %v974 = vrot.slane %v874, 7
    %v976 = vmul.f32 %v971, %v974
    %978 = vrot.lane.b32.xlu0 %v972, 64
    %v979 = vpop.permute.xlu0 %978
    %v981 = vmul.f32 %v971, %v979
    %983 = vrot.lane.b32.xlu0 %v981, 32
    %v984 = vpop.permute.xlu0 %983
    %v986 = vadd.f32 %v976, %v984
    %v987 = vtanh.pop %v986
    %989 = vrot.lane.b32.xlu0 %v987, 64
    %v990 = vpop.permute.xlu0 %989
    %v992 = vmul.f32 %v971, %v990
    %994 = vrot.lane.b32.xlu0 %v992, 32
    %v995 = vpop.permute.xlu0 %994
    %vm997 = vcmask 261127
    %998 = vst.msk [vmem:[#allocation2] sm:$0x80] %vm997, %v995
    %v999 = vld [vmem:[#allocation2] sm:$0xff]
    %v1000 = vld [vmem:[%s4] sm:$0xff]
    %v1001 = vld [vmem:[%s4 + $0x8] sm:$0xff]
    %v1002 = vld [vmem:[%s4 + $0x10] sm:$0xff]
    %v1003 = vld [vmem:[%s4 + $0x18] sm:$0xff]
    %v1004 = vld [vmem:[%s5] sm:$0x1]
    %v1006 = vlaneseq
    %v1007 = vshrl.u32 %v1006, 7
    %v1008 = vsub.s32 0, %v1007
    %v1009 = vrot.slane %v1004, %v1008
    %v1012 = vsel %vm40, %v999, 0
    %1014 = vmatprep.subr.mxu0 0.0
    %1015 = vmatpush1.msra.mxu0 0.0
    %1016 = vmatprep.subr.mxu0 0.0
    %1017 = vmatpush1.msra.mxu0 0.0
    %1018 = vmatprep.subr.mxu0 0.0
    %1019 = vmatpush1.msra.mxu0 0.0
    %1020 = vmatprep.subr.mxu0 0.0
    %1021 = vmatpush1.msra.mxu0 0.0
    %1022 = vmatprep.subr.mxu0 0.0
    %1023 = vmatpush1.msra.mxu0 0.0
    %1024 = vmatprep.subr.mxu0 0.0
    %1025 = vmatpush1.msra.mxu0 0.0
    %1026 = vmatprep.subr.mxu0 0.0
    %1027 = vmatpush1.msra.mxu0 0.0
    %1028 = vmatprep.subr.mxu0 0.0
    %1029 = vmatpush1.msra.mxu0 0.0
    %1030 = vmatprep.subr.mxu0 0.0
    %1031 = vmatpush1.msra.mxu0 0.0
    %1032 = vmatprep.subr.mxu0 0.0
    %1033 = vmatpush1.msra.mxu0 0.0
    %1034 = vmatprep.subr.mxu0 0.0
    %1035 = vmatpush1.msra.mxu0 0.0
    %1036 = vmatprep.subr.mxu0 0.0
    %1037 = vmatpush1.msra.mxu0 0.0
    %1038 = vmatprep.subr.mxu0 0.0
    %1039 = vmatpush1.msra.mxu0 %v1003
    %1040 = vmatprep.subr.mxu0 0.0
    %1041 = vmatpush1.msra.mxu0 %v1002
    %1042 = vmatprep.subr.mxu0 0.0
    %1043 = vmatpush1.msra.mxu0 %v1001
    %1044 = vmatprep.subr.mxu0 0.0
    %1045 = vmatpush1.msra.mxu0 %v1000
    %1046 = vmatprep.subr.mxu0 0.0
    %1047 = vmatpush2.msra.mxu0 0.0
    %1048 = vmatprep.subr.mxu0 0.0
    %1049 = vmatpush2.msra.mxu0 0.0
    %1050 = vmatprep.subr.mxu0 0.0
    %1051 = vmatpush2.msra.mxu0 0.0
    %1052 = vmatprep.subr.mxu0 0.0
    %1053 = vmatpush2.msra.mxu0 0.0
    %1054 = vmatprep.subr.mxu0 0.0
    %1055 = vmatpush2.msra.mxu0 0.0
    %1056 = vmatprep.subr.mxu0 0.0
    %1057 = vmatpush2.msra.mxu0 0.0
    %1058 = vmatprep.subr.mxu0 0.0
    %1059 = vmatpush2.msra.mxu0 0.0
    %1060 = vmatprep.subr.mxu0 0.0
    %1061 = vmatpush2.msra.mxu0 0.0
    %1062 = vmatprep.subr.mxu0 0.0
    %1063 = vmatpush2.msra.mxu0 0.0
    %1064 = vmatprep.subr.mxu0 0.0
    %1065 = vmatpush2.msra.mxu0 0.0
    %1066 = vmatprep.subr.mxu0 0.0
    %1067 = vmatpush2.msra.mxu0 0.0
    %1068 = vmatprep.subr.mxu0 0.0
    %1069 = vmatpush2.msra.mxu0 0.0
    %1070 = vmatprep.subr.mxu0 0.0
    %1071 = vmatpush2.msra.mxu0 0.0
    %1072 = vmatprep.subr.mxu0 0.0
    %1073 = vmatpush2.msra.mxu0 0.0
    %1074 = vmatprep.subr.mxu0 0.0
    %1075 = vmatpush2.msra.mxu0 0.0
    %1076 = vmatprep.subr.mxu0 0.0
    %1077 = vmatpush2.msra.mxu0 0.0
    %1078 = vmatprep.mubr.f32.mxu0 0.0
    %1079 = vmatmul.mubr.f32.gmra.mxu0 %v1012
    %v1080 = vpop.f32.mrf.mxu0
    %v1081 = vadd.f32 %v1009, %v1080
    %v1082 = vpop.f32.mrf.mxu0
    %1083 = vdwg.mxu0
    %1084 = vmax.xlane.f32.xlu0 %v1081
    %v1085 = vpop.xlane.xlu0 %1084
    %v1086 = vsub.f32 %v1081, %v1085
    %v1087 = vmul.f32 %v1086, 1.442695
    %v1088 = vpow.pop %v1087
    %1089 = vadd.xlane.f32.xlu0 %v1088
    %v1090 = vpop.xlane.xlu0 %1089
    %v1091 = vlog2.pop %v1090
    %v1092 = vmul.f32 %v1091, 0.6931472
    %v1093 = vsub.f32 %v1086, %v1092
    %1094 = vst [vmem:[#allocation3] sm:$0xff] %v1093
    // Predicated region
    $region26: #{lstm_tagger_forward.1} parent=1 // pred_check
      _
    $region27: #{lstm_tagger_forward.1} parent=1 // pred_check_branch
      %1096 = sbr.rel (0) target = $region29
    $region28: #{lstm_tagger_forward.1} parent=1 // pred_region
      %s1098 = ssub.s32 128, 128
      %1099 = vsyncadd [#allocation4], %s1098
      %s1101 = sshll.u32 [#allocation3], 4
      %s1102 = int_to_ptr.vmem [resolvable:$true] %s1101
      %1104 = dma.vmem_to_hbm [thread:$0]  %s1102, 128, %s6, [#allocation4]
    $region29: #{lstm_tagger_forward.1} parent=1 // pred_fallthru
      _
    // Predicated region
    $region30: #{lstm_tagger_forward.1} parent=1 // pred_check
      _
    $region31: #{lstm_tagger_forward.1} parent=1 // pred_check_branch
      %1106 = sbr.rel (0) target = $region33
    $region32: #{lstm_tagger_forward.1} parent=1 // pred_region
      %1107 = dma.done [#allocation4], 128
    $region33: #{lstm_tagger_forward.1} parent=1 // pred_fallthru
      _
    %1108 = vsyncpa [#allocation4], 1

</llo_original>
